<compile_context>
chip_gen: v5e
topology: v5e:2x2
jax: 0.10.0
libtpu: 0.0.40
codegen_flags: <defaults>
</compile_context>

<pallas_src>
import jax
import jax.numpy as jnp
from jax.experimental import pallas as pl
from jax.experimental.pallas import tpu as pltpu


def _make_huber_tile_kernel(tile_r: int, lane_w: int):
    """Per-tile Huber loss folded to an (8, lane_w) partial sum (pure VPU work)."""
    groups = tile_r // 8

    def kernel(yt_ref, yp_ref, out_ref):
        yt = yt_ref[...].astype(jnp.float32)
        yp = yp_ref[...].astype(jnp.float32)
        err = yt - yp
        abs_err = jnp.abs(err)
        loss = jnp.where(abs_err < 1.0, 0.5 * err * err, abs_err - 0.5)
        # Fold (tile_r, lane_w) -> (8, lane_w): sum over row-groups only
        # (no cross-lane/sublane XLU reduce inside the hot loop).
        partial = loss.reshape(groups, 8, lane_w).sum(axis=0)
        out_ref[0] = partial

    return kernel


def huber_loss(y_true: jax.Array, y_pred: jax.Array, *,
               lane_width: int = 512, max_tile_rows: int = 1024) -> jax.Array:
    assert y_true.shape == y_pred.shape
    total = y_true.size
    assert total > 0

    yt = y_true.reshape(-1)
    yp = y_pred.reshape(-1)

    W = lane_width                                        # lane-dense: multiple of 128
    rows = pl.cdiv(total, W)
    tile_r = min(max_tile_rows, ((rows + 7) // 8) * 8)    # multiple of 8 sublanes
    n_tiles = pl.cdiv(rows, tile_r)
    rows_padded = n_tiles * tile_r
    pad = rows_padded * W - total
    if pad:
        # Pad BOTH inputs identically with zeros: err = 0 -> loss contribution 0.
        yt = jnp.concatenate([yt, jnp.zeros((pad,), yt.dtype)])
        yp = jnp.concatenate([yp, jnp.zeros((pad,), yp.dtype)])
    yt2 = yt.reshape(rows_padded, W)
    yp2 = yp.reshape(rows_padded, W)

    kernel = _make_huber_tile_kernel(tile_r, W)

    partials = pl.pallas_call(
        kernel,
        out_shape=jax.ShapeDtypeStruct((n_tiles, 8, W), jnp.float32),
        grid_spec=pltpu.PrefetchScalarGridSpec(
            num_scalar_prefetch=0,
            grid=(n_tiles,),
            in_specs=[
                pl.BlockSpec((tile_r, W), lambda i: (i, 0)),
                pl.BlockSpec((tile_r, W), lambda i: (i, 0)),
            ],
            out_specs=pl.BlockSpec((1, 8, W), lambda i: (i, 0, 0)),
        ),
        compiler_params=pltpu.CompilerParams(
            dimension_semantics=("parallel",),            # independent blocks; both TCs on v7x
            vmem_limit_bytes=32 * 1024 * 1024,            # headroom on v5e's 16 MiB default
        ),
    )(yt2, yp2)

    # Tiny final reduction + mean normalization outside the kernel.
    return jnp.sum(partials) / jnp.float32(total)


if __name__ == "__main__":
    # Small deterministic inputs: a DQN-style batch of Q-value targets/preds.
    key = jax.random.PRNGKey(0)
    k1, k2 = jax.random.split(key)
    M, N = 32, 128
    y_true = jax.random.normal(k1, (M, N), dtype=jnp.float32) * 2.0
    y_pred = jax.random.normal(k2, (M, N), dtype=jnp.float32) * 2.0

    loss = huber_loss(y_true, y_pred)
    loss = jax.block_until_ready(loss)

    # Pure-JAX reference check of the exact PyTorch semantics.
    err = y_true - y_pred
    ref = jnp.mean(jnp.where(jnp.abs(err) < 1.0, 0.5 * err ** 2, jnp.abs(err) - 0.5))
    assert jnp.allclose(loss, ref, rtol=1e-5, atol=1e-5), (loss, ref)

    # Also exercise a non-aligned shape to verify the padding path.
    M2, N2 = 17, 5
    a = jax.random.normal(k1, (M2, N2), dtype=jnp.float32) * 3.0
    b = jax.random.normal(k2, (M2, N2), dtype=jnp.float32) * 3.0
    loss2 = jax.block_until_ready(huber_loss(a, b))
    err2 = a - b
    ref2 = jnp.mean(jnp.where(jnp.abs(err2) < 1.0, 0.5 * err2 ** 2, jnp.abs(err2) - 0.5))
    assert jnp.allclose(loss2, ref2, rtol=1e-5, atol=1e-5), (loss2, ref2)

    print("KERNEL_OK")
</pallas_src>

<mosaic_0001>
module attributes {stable_mosaic.version = 11 : i64} {
  func.func @kernel(%arg0: i32, %arg1: memref<8x512xf32, #tpu.memory_space<vmem>>, %arg2: memref<8x512xf32, #tpu.memory_space<vmem>>, %arg3: memref<1x8x512xf32, #tpu.memory_space<vmem>>) attributes {dimension_semantics = [#tpu.dimension_semantics<parallel>], iteration_bounds = array<i64: 1>, scalar_prefetch = 0 : i64, scratch_operands = 0 : i64, tpu.core_type = #tpu.core_type<tc>, window_params = [{transform_indices = @transform_0, window_bounds = array<i64: 8, 512>}, {transform_indices = @transform_1, window_bounds = array<i64: 8, 512>}, {transform_indices = @transform_2, window_bounds = array<i64: 1, 8, 512>}]} {
    %c0 = arith.constant 0 : index
    %c0_0 = arith.constant 0 : index
    %0 = vector.load %arg1[%c0, %c0_0] : memref<8x512xf32, #tpu.memory_space<vmem>>, vector<8x512xf32>
    %c0_1 = arith.constant 0 : index
    %c0_2 = arith.constant 0 : index
    %1 = vector.load %arg2[%c0_1, %c0_2] : memref<8x512xf32, #tpu.memory_space<vmem>>, vector<8x512xf32>
    %2 = arith.subf %0, %1 : vector<8x512xf32>
    %3 = math.absf %2 : vector<8x512xf32>
    %cst = arith.constant 1.000000e+00 : f32
    %4 = vector.broadcast %cst : f32 to vector<8x512xf32>
    %5 = arith.cmpf olt, %3, %4 : vector<8x512xf32>
    %cst_3 = arith.constant 5.000000e-01 : f32
    %6 = vector.broadcast %cst_3 : f32 to vector<8x512xf32>
    %7 = arith.mulf %6, %2 : vector<8x512xf32>
    %8 = arith.mulf %7, %2 : vector<8x512xf32>
    %cst_4 = arith.constant 5.000000e-01 : f32
    %9 = vector.broadcast %cst_4 : f32 to vector<8x512xf32>
    %10 = arith.subf %3, %9 : vector<8x512xf32>
    %11 = arith.select %5, %8, %10 : vector<8x512xi1>, vector<8x512xf32>
    %12 = vector.shape_cast %11 : vector<8x512xf32> to vector<1x8x512xf32>
    %cst_5 = arith.constant dense<0.000000e+00> : vector<8x512xf32>
    %13 = vector.multi_reduction <add>, %12, %cst_5 [0] : vector<1x8x512xf32> to vector<8x512xf32>
    %c0_6 = arith.constant 0 : index
    %c0_7 = arith.constant 0 : index
    %c0_8 = arith.constant 0 : index
    %14 = vector.load %arg3[%c0_6, %c0_7, %c0_8] : memref<1x8x512xf32, #tpu.memory_space<vmem>>, vector<1x8x512xf32>
    %15 = vector.shape_cast %14 : vector<1x8x512xf32> to vector<8x512xf32>
    %16 = vector.shape_cast %13 : vector<8x512xf32> to vector<1x8x512xf32>
    tpu.vector_store %arg3[%c0_6, %c0_7, %c0_8], %16 {strides = array<i32>} : memref<1x8x512xf32, #tpu.memory_space<vmem>>, vector<1x8x512xf32>,
    return
  }
  func.func @transform_0(%arg0: i32) -> (i32, i32) {
    %c0_i32 = arith.constant 0 : i32
    %c0_i32_0 = arith.constant 0 : i32
    return %arg0, %c0_i32 : i32, i32
  }
  func.func @transform_1(%arg0: i32) -> (i32, i32) {
    %c0_i32 = arith.constant 0 : i32
    %c0_i32_0 = arith.constant 0 : i32
    return %arg0, %c0_i32 : i32, i32
  }
  func.func @transform_2(%arg0: i32) -> (i32, i32, i32) {
    %c0_i32 = arith.constant 0 : i32
    %c0_i32_0 = arith.constant 0 : i32
    %c0_i32_1 = arith.constant 0 : i32
    return %arg0, %c0_i32, %c0_i32_0 : i32, i32, i32
  }
}

</mosaic_0001>

<llo_original>
// kernel: tpu_custom_call.1
$region0: #{tpu_custom_call.1}
  #allocation0 [shape = 'u32[]', space=smem, size = 0x4, offset = 0x4, fixed_abs, tag = 'smem constant byte address 0x4 - core index']
  #allocation1 [shape = 'u32[72,128]{1,0:T(1,128)}', space=vmem, size = 0x9000, scoped, tag = 'internal scratch']
  %s0 = inlined_call_operand.hbm [shape: f32[8,512], index: 0, kind: input, shape index: {}]
  %s1 = inlined_call_operand.hbm [shape: f32[8,512], index: 1, kind: input, shape index: {}]
  %s2 = inlined_call_operand.hbm [shape: f32[1,8,512], index: 2, kind: output, shape index: {}]
  %s3 = sld [smem:[#allocation0]]
  $region26: #{tpu_custom_call.1} parent=0
    _
  %s5 = ssub.s32 1, %s3
  %s6 = scalar_select 0, %s5, %s3
  $region1: #{tpu_custom_call.1} parent=0
    #allocation2 [shape = 'u8[16384]{0}', space=vmem, size = 0x4000, scoped, tag = 'input window, operand 0, single buffered']
    #allocation3 [shape = 's32[1]{0}', space=sflag, size = 0x4, scoped, tag = 'scoped memory for tpu_custom_call.1']
    #allocation4 [shape = 's32[1]{0}', space=sflag, size = 0x4, scoped, tag = 'scoped memory for tpu_custom_call.1']
    #allocation5 [shape = 'u8[16384]{0}', space=vmem, size = 0x4000, scoped, tag = 'input window, operand 1, single buffered']
    #allocation6 [shape = 's32[1]{0}', space=sflag, size = 0x4, scoped, tag = 'scoped memory for tpu_custom_call.1']
    #allocation7 [shape = 'u8[16384]{0}', space=vmem, size = 0x4000, scoped, tag = 'output window, operand 0, single buffered']
    %7 = vsyncpa [#allocation3], 0
    %8 = vsyncpa [#allocation6], 0
    %9 = vsyncpa [#allocation4], 0
    // Predicated region
    $region2: #{tpu_custom_call.1} parent=1 // pred_check
      _
    $region3: #{tpu_custom_call.1} parent=1 // pred_check_branch
      %11 = sbr.rel (0) target = $region5
    $region4: #{tpu_custom_call.1} parent=1 // pred_region
      %13 = vsyncadd [#allocation3], 0
      %s15 = sshll.u32 %s0, 4
      %s16 = int_to_ptr.hbm [resolvable:$true] %s15
      %s17 = sshll.u32 [#allocation2], 4
      %s18 = int_to_ptr.vmem [resolvable:$true] %s17
      %20 = dma.hbm_to_vmem [thread:$0]  %s16, 512, %s18, [#allocation3]
    $region5: #{tpu_custom_call.1} parent=1 // pred_fallthru
      _
    // Predicated region
    $region6: #{tpu_custom_call.1} parent=1 // pred_check
      _
    $region7: #{tpu_custom_call.1} parent=1 // pred_check_branch
      %22 = sbr.rel (0) target = $region9
    $region8: #{tpu_custom_call.1} parent=1 // pred_region
      %24 = vsyncadd [#allocation6], 0
      %s26 = sshll.u32 %s1, 4
      %s27 = int_to_ptr.hbm [resolvable:$true] %s26
      %s28 = sshll.u32 [#allocation5], 4
      %s29 = int_to_ptr.vmem [resolvable:$true] %s28
      %31 = dma.hbm_to_vmem [thread:$0]  %s27, 512, %s29, [#allocation6]
    $region9: #{tpu_custom_call.1} parent=1 // pred_fallthru
      _
    // Predicated region
    $region10: #{tpu_custom_call.1} parent=1 // pred_check
      _
    $region11: #{tpu_custom_call.1} parent=1 // pred_check_branch
      %33 = sbr.rel (0) target = $region13
    $region12: #{tpu_custom_call.1} parent=1 // pred_region
      %35 = dma.done [#allocation3], 512
    $region13: #{tpu_custom_call.1} parent=1 // pred_fallthru
      _
    // Predicated region
    $region14: #{tpu_custom_call.1} parent=1 // pred_check
      _
    $region15: #{tpu_custom_call.1} parent=1 // pred_check_branch
      %37 = sbr.rel (0) target = $region17
    $region16: #{tpu_custom_call.1} parent=1 // pred_region
      %39 = dma.done [#allocation6], 512
    $region17: #{tpu_custom_call.1} parent=1 // pred_fallthru
      _
    %v40 = vld [vmem:[#allocation2] sm:$0xff]
    %v41 = vld [vmem:[#allocation2 + $0x8] sm:$0xff]
    %v42 = vld [vmem:[#allocation2 + $0x10] sm:$0xff]
    %v43 = vld [vmem:[#allocation2 + $0x18] sm:$0xff]
    %v44 = vld [vmem:[#allocation5] sm:$0xff]
    %v45 = vld [vmem:[#allocation5 + $0x8] sm:$0xff]
    %v46 = vld [vmem:[#allocation5 + $0x10] sm:$0xff]
    %v47 = vld [vmem:[#allocation5 + $0x18] sm:$0xff]
    %v48 = vsub.f32 %v40, %v44
    %v49 = vsub.f32 %v41, %v45
    %v50 = vsub.f32 %v42, %v46
    %v51 = vsub.f32 %v43, %v47
    %v52 = vand.u32 2147483647, %v48
    %v53 = vand.u32 2147483647, %v49
    %v54 = vand.u32 2147483647, %v50
    %v55 = vand.u32 2147483647, %v51
    %vm56 = vcmp.lt.f32.partialorder %v52, 1.0
    %vm57 = vcmp.lt.f32.partialorder %v53, 1.0
    %vm58 = vcmp.lt.f32.partialorder %v54, 1.0
    %vm59 = vcmp.lt.f32.partialorder %v55, 1.0
    %v60 = vmul.f32 %v48, 0.5
    %v61 = vmul.f32 %v49, 0.5
    %v62 = vmul.f32 %v50, 0.5
    %v63 = vmul.f32 %v51, 0.5
    %v64 = vmul.f32 %v60, %v48
    %v65 = vmul.f32 %v61, %v49
    %v66 = vmul.f32 %v62, %v50
    %v67 = vmul.f32 %v63, %v51
    %v68 = vsub.f32 %v52, 0.5
    %v69 = vsub.f32 %v53, 0.5
    %v70 = vsub.f32 %v54, 0.5
    %v71 = vsub.f32 %v55, 0.5
    %v72 = vsel %vm56, %v64, %v68
    %v73 = vsel %vm57, %v65, %v69
    %v74 = vsel %vm58, %v66, %v70
    %v75 = vsel %vm59, %v67, %v71
    %v76 = vadd.f32 %v72, 0.0
    %v77 = vadd.f32 %v73, 0.0
    %v78 = vadd.f32 %v74, 0.0
    %v79 = vadd.f32 %v75, 0.0
    %80 = vst [vmem:[#allocation7] sm:$0xff] %v76
    %81 = vst [vmem:[#allocation7 + $0x8] sm:$0xff] %v77
    %82 = vst [vmem:[#allocation7 + $0x10] sm:$0xff] %v78
    %83 = vst [vmem:[#allocation7 + $0x18] sm:$0xff] %v79
    // Predicated region
    $region18: #{tpu_custom_call.1} parent=1 // pred_check
      _
    $region19: #{tpu_custom_call.1} parent=1 // pred_check_branch
      %85 = sbr.rel (0) target = $region21
    $region20: #{tpu_custom_call.1} parent=1 // pred_region
      %87 = vsyncadd [#allocation4], 0
      %s89 = sshll.u32 [#allocation7], 4
      %s90 = int_to_ptr.vmem [resolvable:$true] %s89
      %s91 = sshll.u32 %s2, 4
      %s92 = int_to_ptr.hbm [resolvable:$true] %s91
      %94 = dma.vmem_to_hbm [thread:$0]  %s90, 512, %s92, [#allocation4]
    $region21: #{tpu_custom_call.1} parent=1 // pred_fallthru
      _
    // Predicated region
    $region22: #{tpu_custom_call.1} parent=1 // pred_check
      _
    $region23: #{tpu_custom_call.1} parent=1 // pred_check_branch
      %96 = sbr.rel (0) target = $region25
    $region24: #{tpu_custom_call.1} parent=1 // pred_region
      %98 = dma.done [#allocation4], 512
    $region25: #{tpu_custom_call.1} parent=1 // pred_fallthru
      _
    %99 = vsyncpa [#allocation3], 1
    %100 = vsyncpa [#allocation6], 1
    %101 = vsyncpa [#allocation4], 1

</llo_original>
